<compile_context>
chip_gen: v7x
topology: tpu7x:2x2x1
jax: 0.10.0
libtpu: 0.0.40
codegen_flags: <defaults>
</compile_context>

<pallas_src>
import jax
import jax.numpy as jnp
from jax.experimental import pallas as pl
from jax.experimental.pallas import tpu as pltpu

_LANE = 512             # lane-dense last dim (multiple of 128)
_MAX_BLOCK_ROWS = 1024  # 1024 x 512 f32 = 2 MiB per input block
_NUM_PARALLEL = 2       # leading "parallel" grid axis (both TCs on v7x)


def _cdiv(a, b):
    return -(-a // b)


def _round_up(a, b):
    return _cdiv(a, b) * b


def _silog_partial_kernel(pred_ref, target_ref, sum_ref, sumsq_ref, cnt_ref):
    step = pl.program_id(1)

    @pl.when(step == 0)
    def _():
        sum_ref[...] = jnp.zeros_like(sum_ref)
        sumsq_ref[...] = jnp.zeros_like(sumsq_ref)
        cnt_ref[...] = jnp.zeros_like(cnt_ref)

    tgt = target_ref[...].astype(jnp.float32)
    prd = pred_ref[...].astype(jnp.float32)

    valid = tgt > 0.0
    # Masked elements become log(1/1) == 0 exactly, so they add nothing and no
    # NaN/Inf leaks into the sums (padding rows are target==0 -> invalid).
    safe_t = jnp.where(valid, tgt, 1.0)
    safe_p = jnp.where(valid, prd, 1.0)
    d = jnp.log(safe_t / safe_p)  # fused: one log per element instead of two

    br, lane = d.shape
    # Tile-preserving reshape: groups of 8 rows -> leading axis; reducing over
    # the leading axis is plain vector adds (VPU), not a cross-lane XLU reduce.
    d3 = d.reshape(br // 8, 8, lane)
    v3 = valid.astype(jnp.float32).reshape(br // 8, 8, lane)

    sum_ref[...] += jnp.sum(d3, axis=0)
    sumsq_ref[...] += jnp.sum(d3 * d3, axis=0)
    cnt_ref[...] += jnp.sum(v3, axis=0)


def silog_loss(pred, target, lambd=0.5):
    """pred, target: same shape (e.g. (N, 1, H, W)). Returns scalar f32 loss."""
    assert pred.shape == target.shape
    total = 1
    for s in pred.shape:
        total *= s

    rows_needed = _cdiv(total, _LANE)
    block_rows = min(
        _MAX_BLOCK_ROWS,
        _round_up(max(_cdiv(rows_needed, _NUM_PARALLEL), 1), 8),
    )
    steps = max(_cdiv(rows_needed, _NUM_PARALLEL * block_rows), 1)
    padded_rows = _NUM_PARALLEL * steps * block_rows
    padded_total = padded_rows * _LANE

    flat_p = pred.reshape(-1)
    flat_t = target.reshape(-1)
    pad = padded_total - total
    if pad:
        # target padded with 0 -> valid==False -> contributes nothing.
        flat_p = jnp.pad(flat_p, (0, pad))
        flat_t = jnp.pad(flat_t, (0, pad))
    pred2d = flat_p.reshape(padded_rows, _LANE)
    target2d = flat_t.reshape(padded_rows, _LANE)

    acc_shape = jax.ShapeDtypeStruct((_NUM_PARALLEL * 8, _LANE), jnp.float32)
    acc_spec = pl.BlockSpec((8, _LANE), lambda p, t: (p, 0))
    in_spec = pl.BlockSpec((block_rows, _LANE), lambda p, t: (p * steps + t, 0))

    sums, sumsqs, cnts = pl.pallas_call(
        _silog_partial_kernel,
        out_shape=(acc_shape, acc_shape, acc_shape),
        grid_spec=pltpu.PrefetchScalarGridSpec(
            num_scalar_prefetch=0,
            grid=(_NUM_PARALLEL, steps),
            in_specs=[in_spec, in_spec],
            out_specs=(acc_spec, acc_spec, acc_spec),
        ),
        compiler_params=pltpu.CompilerParams(
            dimension_semantics=("parallel", "arbitrary"),
            vmem_limit_bytes=32 * 1024 * 1024,
        ),
    )(pred2d, target2d)

    # Tiny epilogue (per review): cross-lane reduce the (2*8, 512) partials once.
    s = jnp.sum(sums)
    ss = jnp.sum(sumsqs)
    n = jnp.sum(cnts)
    n_safe = jnp.maximum(n, 1.0)                       # guard: no valid pixels
    mean = s / n_safe
    mean_sq = ss / n_safe
    var = jnp.maximum(mean_sq - lambd * mean * mean, 0.0)  # fp-rounding guard
    return jnp.sqrt(var)


def silog_loss_ref(pred, target, lambd=0.5):
    t = target.reshape(-1).astype(jnp.float32)
    p = pred.reshape(-1).astype(jnp.float32)
    valid = t > 0.0
    d = jnp.where(valid,
                  jnp.log(jnp.where(valid, t, 1.0)) -
                  jnp.log(jnp.where(valid, p, 1.0)), 0.0)
    n = jnp.sum(valid)
    mean = jnp.sum(d) / n
    mean_sq = jnp.sum(d * d) / n
    return jnp.sqrt(mean_sq - lambd * mean * mean)


if __name__ == "__main__":
    key = jax.random.PRNGKey(0)

    # Case 1: standard small depth-map shape.
    kp, kt, key = jax.random.split(key, 3)
    N, C, H, W = 2, 1, 16, 16
    pred = jax.random.uniform(kp, (N, C, H, W), jnp.float32, 0.1, 2.0)
    target = jax.random.uniform(kt, (N, C, H, W), jnp.float32, -0.5, 2.0)
    loss = jax.block_until_ready(silog_loss(pred, target, lambd=0.5))
    ref = jax.block_until_ready(silog_loss_ref(pred, target, lambd=0.5))
    assert jnp.allclose(loss, ref, rtol=1e-5, atol=1e-6), (loss, ref)

    # Case 2: ragged shape (exercises padding / non-divisible sizes).
    kp2, kt2, key = jax.random.split(key, 3)
    pred2 = jax.random.uniform(kp2, (1, 1, 17, 23), jnp.float32, 0.1, 2.0)
    target2 = jax.random.uniform(kt2, (1, 1, 17, 23), jnp.float32, -0.5, 2.0)
    loss2 = jax.block_until_ready(silog_loss(pred2, target2, lambd=0.5))
    ref2 = jax.block_until_ready(silog_loss_ref(pred2, target2, lambd=0.5))
    assert jnp.allclose(loss2, ref2, rtol=1e-5, atol=1e-6), (loss2, ref2)

    print("KERNEL_OK")
</pallas_src>

<mosaic_0001>
module attributes {stable_mosaic.version = 11 : i64} {
  func.func @_silog_partial_kernel(%arg0: i32, %arg1: i32, %arg2: memref<8x512xf32, #tpu.memory_space<vmem>>, %arg3: memref<8x512xf32, #tpu.memory_space<vmem>>, %arg4: memref<8x512xf32, #tpu.memory_space<vmem>>, %arg5: memref<8x512xf32, #tpu.memory_space<vmem>>, %arg6: memref<8x512xf32, #tpu.memory_space<vmem>>) attributes {dimension_semantics = [#tpu.dimension_semantics<parallel>, #tpu.dimension_semantics<arbitrary>], iteration_bounds = array<i64: 2, 1>, scalar_prefetch = 0 : i64, scratch_operands = 0 : i64, tpu.core_type = #tpu.core_type<tc>, window_params = [{transform_indices = @transform_0, window_bounds = array<i64: 8, 512>}, {transform_indices = @transform_1, window_bounds = array<i64: 8, 512>}, {transform_indices = @transform_2, window_bounds = array<i64: 8, 512>}, {transform_indices = @transform_3, window_bounds = array<i64: 8, 512>}, {transform_indices = @transform_4, window_bounds = array<i64: 8, 512>}]} {
    %c0_i32 = arith.constant 0 : i32
    %0 = arith.cmpi eq, %arg1, %c0_i32 : i32
    %1 = arith.extui %0 : i1 to i32
    %c0_i32_0 = arith.constant 0 : i32
    %2 = arith.cmpi ne, %1, %c0_i32_0 : i32
    scf.if %2 {
      %cst_21 = arith.constant 0.000000e+00 : f32
      %30 = vector.broadcast %cst_21 : f32 to vector<8x512xf32>
      %c0_22 = arith.constant 0 : index
      %c0_23 = arith.constant 0 : index
      %31 = vector.load %arg4[%c0_22, %c0_23] : memref<8x512xf32, #tpu.memory_space<vmem>>, vector<8x512xf32>
      tpu.vector_store %arg4[%c0_22, %c0_23], %30 {strides = array<i32>} : memref<8x512xf32, #tpu.memory_space<vmem>>, vector<8x512xf32>,
      %cst_24 = arith.constant 0.000000e+00 : f32
      %32 = vector.broadcast %cst_24 : f32 to vector<8x512xf32>
      %c0_25 = arith.constant 0 : index
      %c0_26 = arith.constant 0 : index
      %33 = vector.load %arg5[%c0_25, %c0_26] : memref<8x512xf32, #tpu.memory_space<vmem>>, vector<8x512xf32>
      tpu.vector_store %arg5[%c0_25, %c0_26], %32 {strides = array<i32>} : memref<8x512xf32, #tpu.memory_space<vmem>>, vector<8x512xf32>,
      %cst_27 = arith.constant 0.000000e+00 : f32
      %34 = vector.broadcast %cst_27 : f32 to vector<8x512xf32>
      %c0_28 = arith.constant 0 : index
      %c0_29 = arith.constant 0 : index
      %35 = vector.load %arg6[%c0_28, %c0_29] : memref<8x512xf32, #tpu.memory_space<vmem>>, vector<8x512xf32>
      tpu.vector_store %arg6[%c0_28, %c0_29], %34 {strides = array<i32>} : memref<8x512xf32, #tpu.memory_space<vmem>>, vector<8x512xf32>,
    } else {
    }
    %c0 = arith.constant 0 : index
    %c0_1 = arith.constant 0 : index
    %3 = vector.load %arg3[%c0, %c0_1] : memref<8x512xf32, #tpu.memory_space<vmem>>, vector<8x512xf32>
    %c0_2 = arith.constant 0 : index
    %c0_3 = arith.constant 0 : index
    %4 = vector.load %arg2[%c0_2, %c0_3] : memref<8x512xf32, #tpu.memory_space<vmem>>, vector<8x512xf32>
    %cst = arith.constant 0.000000e+00 : f32
    %5 = vector.broadcast %cst : f32 to vector<8x512xf32>
    %6 = arith.cmpf ogt, %3, %5 : vector<8x512xf32>
    %cst_4 = arith.constant 1.000000e+00 : f32
    %7 = vector.broadcast %cst_4 : f32 to vector<8x512xf32>
    %8 = arith.select %6, %3, %7 : vector<8x512xi1>, vector<8x512xf32>
    %cst_5 = arith.constant 1.000000e+00 : f32
    %9 = vector.broadcast %cst_5 : f32 to vector<8x512xf32>
    %10 = arith.select %6, %4, %9 : vector<8x512xi1>, vector<8x512xf32>
    %11 = arith.divf %8, %10 : vector<8x512xf32>
    %12 = math.log %11 : vector<8x512xf32>
    %13 = vector.shape_cast %12 : vector<8x512xf32> to vector<1x8x512xf32>
    %14 = arith.extui %6 : vector<8x512xi1> to vector<8x512xi32>
    %15 = arith.sitofp %14 : vector<8x512xi32> to vector<8x512xf32>
    %16 = vector.shape_cast %15 : vector<8x512xf32> to vector<1x8x512xf32>
    %c0_6 = arith.constant 0 : index
    %c0_7 = arith.constant 0 : index
    %17 = vector.load %arg4[%c0_6, %c0_7] : memref<8x512xf32, #tpu.memory_space<vmem>>, vector<8x512xf32>
    %cst_8 = arith.constant dense<0.000000e+00> : vector<8x512xf32>
    %18 = vector.multi_reduction <add>, %13, %cst_8 [0] : vector<1x8x512xf32> to vector<8x512xf32>
    %19 = arith.addf %17, %18 : vector<8x512xf32>
    %c0_9 = arith.constant 0 : index
    %c0_10 = arith.constant 0 : index
    %20 = vector.load %arg4[%c0_9, %c0_10] : memref<8x512xf32, #tpu.memory_space<vmem>>, vector<8x512xf32>
    tpu.vector_store %arg4[%c0_9, %c0_10], %19 {strides = array<i32>} : memref<8x512xf32, #tpu.memory_space<vmem>>, vector<8x512xf32>,
    %c0_11 = arith.constant 0 : index
    %c0_12 = arith.constant 0 : index
    %21 = vector.load %arg5[%c0_11, %c0_12] : memref<8x512xf32, #tpu.memory_space<vmem>>, vector<8x512xf32>
    %22 = arith.mulf %13, %13 : vector<1x8x512xf32>
    %cst_13 = arith.constant dense<0.000000e+00> : vector<8x512xf32>
    %23 = vector.multi_reduction <add>, %22, %cst_13 [0] : vector<1x8x512xf32> to vector<8x512xf32>
    %24 = arith.addf %21, %23 : vector<8x512xf32>
    %c0_14 = arith.constant 0 : index
    %c0_15 = arith.constant 0 : index
    %25 = vector.load %arg5[%c0_14, %c0_15] : memref<8x512xf32, #tpu.memory_space<vmem>>, vector<8x512xf32>
    tpu.vector_store %arg5[%c0_14, %c0_15], %24 {strides = array<i32>} : memref<8x512xf32, #tpu.memory_space<vmem>>, vector<8x512xf32>,
    %c0_16 = arith.constant 0 : index
    %c0_17 = arith.constant 0 : index
    %26 = vector.load %arg6[%c0_16, %c0_17] : memref<8x512xf32, #tpu.memory_space<vmem>>, vector<8x512xf32>
    %cst_18 = arith.constant dense<0.000000e+00> : vector<8x512xf32>
    %27 = vector.multi_reduction <add>, %16, %cst_18 [0] : vector<1x8x512xf32> to vector<8x512xf32>
    %28 = arith.addf %26, %27 : vector<8x512xf32>
    %c0_19 = arith.constant 0 : index
    %c0_20 = arith.constant 0 : index
    %29 = vector.load %arg6[%c0_19, %c0_20] : memref<8x512xf32, #tpu.memory_space<vmem>>, vector<8x512xf32>
    tpu.vector_store %arg6[%c0_19, %c0_20], %28 {strides = array<i32>} : memref<8x512xf32, #tpu.memory_space<vmem>>, vector<8x512xf32>,
    return
  }
  func.func @transform_0(%arg0: i32, %arg1: i32) -> (i32, i32) {
    %c1_i32 = arith.constant 1 : i32
    %0 = arith.muli %arg0, %c1_i32 : i32
    %1 = arith.addi %0, %arg1 : i32
    %c0_i32 = arith.constant 0 : i32
    %c0_i32_0 = arith.constant 0 : i32
    return %1, %c0_i32 : i32, i32
  }
  func.func @transform_1(%arg0: i32, %arg1: i32) -> (i32, i32) {
    %c1_i32 = arith.constant 1 : i32
    %0 = arith.muli %arg0, %c1_i32 : i32
    %1 = arith.addi %0, %arg1 : i32
    %c0_i32 = arith.constant 0 : i32
    %c0_i32_0 = arith.constant 0 : i32
    return %1, %c0_i32 : i32, i32
  }
  func.func @transform_2(%arg0: i32, %arg1: i32) -> (i32, i32) {
    %c0_i32 = arith.constant 0 : i32
    %c0_i32_0 = arith.constant 0 : i32
    return %arg0, %c0_i32 : i32, i32
  }
  func.func @transform_3(%arg0: i32, %arg1: i32) -> (i32, i32) {
    %c0_i32 = arith.constant 0 : i32
    %c0_i32_0 = arith.constant 0 : i32
    return %arg0, %c0_i32 : i32, i32
  }
  func.func @transform_4(%arg0: i32, %arg1: i32) -> (i32, i32) {
    %c0_i32 = arith.constant 0 : i32
    %c0_i32_0 = arith.constant 0 : i32
    return %arg0, %c0_i32 : i32, i32
  }
}

</mosaic_0001>

<llo_original>
// kernel: tpu_custom_call.1
$region0: #{tpu_custom_call.1}
  #allocation0 [shape = 'u32[]', space=smem, size = 0x4, offset = 0x4, fixed_abs, tag = 'smem constant byte address 0x4 - core index']
  #allocation1 [shape = 'u32[144,128]{1,0:T(1,128)}', space=vmem, size = 0x12000, scoped, tag = 'internal scratch']
  %s0 = inlined_call_operand.hbm [shape: f32[16,512], index: 0, kind: input, shape index: {}]
  %s1 = inlined_call_operand.hbm [shape: f32[16,512], index: 1, kind: input, shape index: {}]
  %s2 = inlined_call_operand.hbm [shape: f32[16,512], index: 2, kind: output, shape index: {0}]
  %s3 = inlined_call_operand.hbm [shape: f32[16,512], index: 3, kind: output, shape index: {1}]
  %s4 = inlined_call_operand.hbm [shape: f32[16,512], index: 4, kind: output, shape index: {2}]
  %5 = xla_tuple %s2, %s3, %s4
  %s6 = sld [smem:[#allocation0]]
  $region69: #{tpu_custom_call.1} parent=0
    _
  %s8 = ssub.s32 1, %s6
  %s9 = scalar_select 0, %s8, %s6
  $region1: #{tpu_custom_call.1} parent=0
    #allocation2 [shape = 'u8[32768]{0}', space=vmem, size = 0x8000, scoped, tag = 'input window, operand 0']
    #allocation3 [shape = 's32[2]{0}', space=sflag, size = 0x8, scoped, tag = 'scoped memory for tpu_custom_call.1']
    #allocation4 [shape = 's32[2]{0}', space=sflag, size = 0x8, scoped, tag = 'scoped memory for tpu_custom_call.1']
    #allocation5 [shape = 'u8[32768]{0}', space=vmem, size = 0x8000, scoped, tag = 'input window, operand 1']
    #allocation6 [shape = 's32[2]{0}', space=sflag, size = 0x8, scoped, tag = 'scoped memory for tpu_custom_call.1']
    #allocation7 [shape = 'u8[32768]{0}', space=vmem, size = 0x8000, scoped, tag = 'output window, operand 0']
    #allocation8 [shape = 'u8[32768]{0}', space=vmem, size = 0x8000, scoped, tag = 'output window, operand 1']
    #allocation9 [shape = 's32[2]{0}', space=sflag, size = 0x8, scoped, tag = 'scoped memory for tpu_custom_call.1']
    #allocation10 [shape = 'u8[32768]{0}', space=vmem, size = 0x8000, scoped, tag = 'output window, operand 2']
    %10 = vsyncpa [#allocation3], 0
    %s11 = scalar_lea.sflag [#allocation3], 1
    %12 = vsyncpa %s11, 0
    %13 = vsyncpa [#allocation6], 0
    %s14 = scalar_lea.sflag [#allocation6], 1
    %15 = vsyncpa %s14, 0
    %16 = vsyncpa [#allocation4], 0
    %s17 = scalar_lea.sflag [#allocation4], 1
    %18 = vsyncpa %s17, 0
    %19 = vsyncpa [#allocation9], 0
    %s20 = scalar_lea.sflag [#allocation9], 1
    %21 = vsyncpa %s20, 0
    loop: start=0, step=1, limit=4
    $region2: #{tpu_custom_call.1} parent=1 // loop_pre_header
      _
    $region3: #{tpu_custom_call.1} parent=1 // loop_header
      %s23 = sphi 0, %s27
      %p24 = scmp.ge.s32.totalorder %s23, 4
      %s30 = sphi 0, %s42
      %s31 = sphi 0, %s38
      %s32 = sphi 0, %s30
      %s33 = sphi 0, %s31
      %s34 = sphi 0, %s32
      %s35 = sphi 0, %s33
      %s47 = sphi 0, %s49
      %s50 = sphi 0, %s47
      %s51 = sphi 0, %s50
      %s67 = sphi 0, %s51
      %s75 = sphi 0, %s77
      %s78 = sphi 0, %s75
      %s79 = sphi 0, %s78
      %s95 = sphi 0, %s79
      %s101 = sphi 0, %s103
      %s104 = sphi 0, %s101
      %s105 = sphi 0, %s104
      %s121 = sphi 0, %s105
      %s127 = sphi 0, %s129
      %s130 = sphi 0, %s127
      %s131 = sphi 0, %s130
      %s147 = sphi 0, %s131
      %s153 = sphi 0, %s155
      %s156 = sphi 0, %s153
      %s157 = sphi 0, %s156
      %s173 = sphi 0, %s157
    $region4: #{tpu_custom_call.1} parent=1 // loop_header_branch
      %26 = sbr.rel (%p24) target = $region8
    $region5: #{tpu_custom_call.1} parent=1 // loop_body
      %s28 = ssub.s32 %s23, 1
      %s29 = ssub.s32 %s23, 2
      %s36 = sadd.s32 1, %s31
      %p37 = scmp.ge.s32.totalorder %s36, 1
      %s38 = scalar_select %p37, 0, %s36
      %s39 = sadd.s32 1, %s30
      %s40 = scalar_select %p37, %s39, %s30
      %p41 = scmp.ge.s32.totalorder %s40, 2
      %s42 = scalar_select %p41, 0, %s40
      %s43 = sadd.s32 %s30, %s31
      %s44 = sadd.s32 %s42, %s38
      %s45 = ssub.s32 %s43, %s44
      %p46 = scmp.eq.s32.totalorder %s45, 0
      %s48 = sadd.s32 %s47, 1
      %s49 = scalar_select %p46, %s47, %s48
      %p52 = pneg %p46
      %p53 = scmp.eq.s32.totalorder %s23, 1
      %p54 = por %p52, %p53
      %p55 = scmp.ne.s32.totalorder %s47, %s50
      %p56 = scmp.eq.s32.totalorder %s23, 0
      %p57 = por %p55, %p56
      %p58 = scmp.ne.s32.totalorder %s47, %s50
      %p59 = scmp.eq.s32.totalorder %s28, 1
      %p60 = por %p58, %p59
      %p61 = scmp.ne.s32.totalorder %s50, %s51
      %p62 = scmp.eq.s32.totalorder %s28, 0
      %p63 = por %p61, %p62
      %p64 = scmp.ne.s32.totalorder %s50, %s51
      %p65 = scmp.eq.s32.totalorder %s29, 1
      %p66 = por %p64, %p65
      %p68 = scmp.ne.s32.totalorder %s51, %s67
      %p69 = scmp.eq.s32.totalorder %s29, 0
      %p70 = por %p68, %p69
      %s71 = sadd.s32 %s30, %s31
      %s72 = sadd.s32 %s42, %s38
      %s73 = ssub.s32 %s71, %s72
      %p74 = scmp.eq.s32.totalorder %s73, 0
      %s76 = sadd.s32 %s75, 1
      %s77 = scalar_select %p74, %s75, %s76
      %p80 = pneg %p74
      %p81 = scmp.eq.s32.totalorder %s23, 1
      %p82 = por %p80, %p81
      %p83 = scmp.ne.s32.totalorder %s75, %s78
      %p84 = scmp.eq.s32.totalorder %s23, 0
      %p85 = por %p83, %p84
      %p86 = scmp.ne.s32.totalorder %s75, %s78
      %p87 = scmp.eq.s32.totalorder %s28, 1
      %p88 = por %p86, %p87
      %p89 = scmp.ne.s32.totalorder %s78, %s79
      %p90 = scmp.eq.s32.totalorder %s28, 0
      %p91 = por %p89, %p90
      %p92 = scmp.ne.s32.totalorder %s78, %s79
      %p93 = scmp.eq.s32.totalorder %s29, 1
      %p94 = por %p92, %p93
      %p96 = scmp.ne.s32.totalorder %s79, %s95
      %p97 = scmp.eq.s32.totalorder %s29, 0
      %p98 = por %p96, %p97
      %s99 = ssub.s32 %s30, %s42
      %p100 = scmp.eq.s32.totalorder %s99, 0
      %s102 = sadd.s32 %s101, 1
      %s103 = scalar_select %p100, %s101, %s102
      %p106 = pneg %p100
      %p107 = scmp.eq.s32.totalorder %s23, 1
      %p108 = por %p106, %p107
      %p109 = scmp.ne.s32.totalorder %s101, %s104
      %p110 = scmp.eq.s32.totalorder %s23, 0
      %p111 = por %p109, %p110
      %p112 = scmp.ne.s32.totalorder %s101, %s104
      %p113 = scmp.eq.s32.totalorder %s28, 1
      %p114 = por %p112, %p113
      %p115 = scmp.ne.s32.totalorder %s104, %s105
      %p116 = scmp.eq.s32.totalorder %s28, 0
      %p117 = por %p115, %p116
      %p118 = scmp.ne.s32.totalorder %s104, %s105
      %p119 = scmp.eq.s32.totalorder %s29, 1
      %p120 = por %p118, %p119
      %p122 = scmp.ne.s32.totalorder %s105, %s121
      %p123 = scmp.eq.s32.totalorder %s29, 0
      %p124 = por %p122, %p123
      %s125 = ssub.s32 %s30, %s42
      %p126 = scmp.eq.s32.totalorder %s125, 0
      %s128 = sadd.s32 %s127, 1
      %s129 = scalar_select %p126, %s127, %s128
      %p132 = pneg %p126
      %p133 = scmp.eq.s32.totalorder %s23, 1
      %p134 = por %p132, %p133
      %p135 = scmp.ne.s32.totalorder %s127, %s130
      %p136 = scmp.eq.s32.totalorder %s23, 0
      %p137 = por %p135, %p136
      %p138 = scmp.ne.s32.totalorder %s127, %s130
      %p139 = scmp.eq.s32.totalorder %s28, 1
      %p140 = por %p138, %p139
      %p141 = scmp.ne.s32.totalorder %s130, %s131
      %p142 = scmp.eq.s32.totalorder %s28, 0
      %p143 = por %p141, %p142
      %p144 = scmp.ne.s32.totalorder %s130, %s131
      %p145 = scmp.eq.s32.totalorder %s29, 1
      %p146 = por %p144, %p145
      %p148 = scmp.ne.s32.totalorder %s131, %s147
      %p149 = scmp.eq.s32.totalorder %s29, 0
      %p150 = por %p148, %p149
      %s151 = ssub.s32 %s30, %s42
      %p152 = scmp.eq.s32.totalorder %s151, 0
      %s154 = sadd.s32 %s153, 1
      %s155 = scalar_select %p152, %s153, %s154
      %p158 = pneg %p152
      %p159 = scmp.eq.s32.totalorder %s23, 1
      %p160 = por %p158, %p159
      %p161 = scmp.ne.s32.totalorder %s153, %s156
      %p162 = scmp.eq.s32.totalorder %s23, 0
      %p163 = por %p161, %p162
      %p164 = scmp.ne.s32.totalorder %s153, %s156
      %p165 = scmp.eq.s32.totalorder %s28, 1
      %p166 = por %p164, %p165
      %p167 = scmp.ne.s32.totalorder %s156, %s157
      %p168 = scmp.eq.s32.totalorder %s28, 0
      %p169 = por %p167, %p168
      %p170 = scmp.ne.s32.totalorder %s156, %s157
      %p171 = scmp.eq.s32.totalorder %s29, 1
      %p172 = por %p170, %p171
      %p174 = scmp.ne.s32.totalorder %s157, %s173
      %p175 = scmp.eq.s32.totalorder %s29, 0
      %p176 = por %p174, %p175
      %p177 = scmp.le.s32.totalorder 1, %s23
      %p178 = scmp.lt.s32.totalorder %s23, 3
      %p179 = pnand %p177, %p178
      %p180 = pneg %p179
      // Predicated region
      $region9: #{tpu_custom_call.1} parent=5 // pred_check
        _
      $region10: #{tpu_custom_call.1} parent=5 // pred_check_branch
        %182 = sbr.rel (%p179) target = $region12
      $region11: #{tpu_custom_call.1} parent=5 // pred_region
        %s183 = ssub.s32 %s23, 1
      $region12: #{tpu_custom_call.1} parent=5 // pred_fallthru
        _
      %p184 = scmp.lt.s32.totalorder %s23, 2
      // Predicated region
      $region13: #{tpu_custom_call.1} parent=5 // pred_check
        %p185 = pneg %p184
      $region14: #{tpu_custom_call.1} parent=5 // pred_check_branch
        %187 = sbr.rel (%p185) target = $region16
      $region15: #{tpu_custom_call.1} parent=5 // pred_region
        // Predicated region
        $region17: #{tpu_custom_call.1} parent=15 // pred_check
          %p188 = pneg %p57
        $region18: #{tpu_custom_call.1} parent=15 // pred_check_branch
          %190 = sbr.rel (%p188) target = $region20
        $region19: #{tpu_custom_call.1} parent=15 // pred_region
          %s191 = sand.u32 %s47, 1
          %s192 = scalar_lea.sflag [#allocation3], %s191
          %s193 = sand.u32 %s47, 1
          %s194 = smul.addr %s193, 32
          %s195 = scalar_lea.vmem [#allocation2], %s194
          %s196 = sadd.s32 %s30, %s31
          %s198 = ssub.s32 512, 512
          %199 = vsyncadd %s192, %s198
          %s200 = smul.addr %s196, 4
          %s201 = smul.addr %s200, 128
          %s202 = scalar_lea.hbm %s0, %s201
          %s204 = sshll.u32 %s195, 4
          %s205 = int_to_ptr.vmem [resolvable:$true] %s204
          %207 = dma.hbm_to_vmem [thread:$0]  %s202, 512, %s205, %s192
        $region20: #{tpu_custom_call.1} parent=15 // pred_fallthru
          _
        // Predicated region
        $region21: #{tpu_custom_call.1} parent=15 // pred_check
          %p208 = pneg %p85
        $region22: #{tpu_custom_call.1} parent=15 // pred_check_branch
          %210 = sbr.rel (%p208) target = $region24
        $region23: #{tpu_custom_call.1} parent=15 // pred_region
          %s211 = sand.u32 %s75, 1
          %s212 = scalar_lea.sflag [#allocation6], %s211
          %s213 = sand.u32 %s75, 1
          %s214 = smul.addr %s213, 32
          %s215 = scalar_lea.vmem [#allocation5], %s214
          %s216 = sadd.s32 %s30, %s31
          %s218 = ssub.s32 512, 512
          %219 = vsyncadd %s212, %s218
          %s220 = smul.addr %s216, 4
          %s221 = smul.addr %s220, 128
          %s222 = scalar_lea.hbm %s1, %s221
          %s224 = sshll.u32 %s215, 4
          %s225 = int_to_ptr.vmem [resolvable:$true] %s224
          %227 = dma.hbm_to_vmem [thread:$0]  %s222, 512, %s225, %s212
        $region24: #{tpu_custom_call.1} parent=15 // pred_fallthru
          _
      $region16: #{tpu_custom_call.1} parent=5 // pred_fallthru
        _
      %p228 = scmp.le.s32.totalorder 1, %s23
      %p229 = scmp.lt.s32.totalorder %s23, 3
      %p230 = pnand %p228, %p229
      %p231 = pneg %p230
      // Predicated region
      $region25: #{tpu_custom_call.1} parent=5 // pred_check
        _
      $region26: #{tpu_custom_call.1} parent=5 // pred_check_branch
        %233 = sbr.rel (%p230) target = $region28
      $region27: #{tpu_custom_call.1} parent=5 // pred_region
        %s234 = ssub.s32 %s23, 1
        %s235 = sand.u32 %s50, 1
        %s236 = scalar_lea.sflag [#allocation3], %s235
        %s237 = sand.u32 %s50, 1
        %s238 = smul.addr %s237, 32
        %s239 = scalar_lea.vmem [#allocation2], %s238
        // Predicated region
        $region29: #{tpu_custom_call.1} parent=27 // pred_check
          %p240 = pneg %p63
        $region30: #{tpu_custom_call.1} parent=27 // pred_check_branch
          %242 = sbr.rel (%p240) target = $region32
        $region31: #{tpu_custom_call.1} parent=27 // pred_region
          %243 = dma.done %s236, 512
        $region32: #{tpu_custom_call.1} parent=27 // pred_fallthru
          _
        %s244 = sand.u32 %s78, 1
        %s245 = scalar_lea.sflag [#allocation6], %s244
        %s246 = sand.u32 %s78, 1
        %s247 = smul.addr %s246, 32
        %s248 = scalar_lea.vmem [#allocation5], %s247
        // Predicated region
        $region33: #{tpu_custom_call.1} parent=27 // pred_check
          %p249 = pneg %p91
        $region34: #{tpu_custom_call.1} parent=27 // pred_check_branch
          %251 = sbr.rel (%p249) target = $region36
        $region35: #{tpu_custom_call.1} parent=27 // pred_region
          %252 = dma.done %s245, 512
        $region36: #{tpu_custom_call.1} parent=27 // pred_fallthru
          _
        %s253 = sand.u32 %s50, 1
        %s254 = scalar_lea.sflag [#allocation3], %s253
        %s255 = sand.u32 %s50, 1
        %s256 = smul.addr %s255, 32
        %s257 = scalar_lea.vmem [#allocation2], %s256
        %p258 = pneg %p63
        %p259 = pneg %p60
        %s260 = sand.u32 %s78, 1
        %s261 = scalar_lea.sflag [#allocation6], %s260
        %s262 = sand.u32 %s78, 1
        %s263 = smul.addr %s262, 32
        %s264 = scalar_lea.vmem [#allocation5], %s263
        %p265 = pneg %p91
        %p266 = pneg %p88
        %p267 = pneg %p117
        %p268 = pneg %p114
        %s269 = sand.u32 %s104, 1
        %s270 = scalar_lea.sflag [#allocation4], %s269
        %s271 = sand.u32 %s104, 1
        %s272 = smul.addr %s271, 32
        %s273 = scalar_lea.vmem [#allocation7], %s272
        %p274 = pneg %p143
        %p275 = pneg %p140
        %s276 = sand.u32 %s28, 1
        %s277 = scalar_lea.sflag [#allocation9], %s276
        %s278 = sand.u32 %s130, 1
        %s279 = smul.addr %s278, 32
        %s280 = scalar_lea.vmem [#allocation8], %s279
        %p281 = pneg %p169
        %p282 = pneg %p166
        %s283 = sand.u32 %s28, 1
        %s284 = scalar_lea.sflag [#allocation9], %s283
        %s285 = sand.u32 %s156, 1
        %s286 = smul.addr %s285, 32
        %s287 = scalar_lea.vmem [#allocation10], %s286
        %s288 = sadd.s32 %s32, %s33
        %s289 = sadd.s32 %s32, %s33
        %p290 = scmp.eq.s32.totalorder %s33, 0
        // Predicated region
        $region37: #{tpu_custom_call.1} parent=27 // pred_check
          %p291 = pneg %p290
        $region38: #{tpu_custom_call.1} parent=27 // pred_check_branch
          %293 = sbr.rel (%p291) target = $region40
        $region39: #{tpu_custom_call.1} parent=27 // pred_region
          %294 = vst [vmem:[%s273] sm:$0xff] 0.0
          %295 = vst [vmem:[%s273 + $0x8] sm:$0xff] 0.0
          %296 = vst [vmem:[%s273 + $0x10] sm:$0xff] 0.0
          %297 = vst [vmem:[%s273 + $0x18] sm:$0xff] 0.0
          %298 = vst [vmem:[%s280] sm:$0xff] 0.0
          %299 = vst [vmem:[%s280 + $0x8] sm:$0xff] 0.0
          %300 = vst [vmem:[%s280 + $0x10] sm:$0xff] 0.0
          %301 = vst [vmem:[%s280 + $0x18] sm:$0xff] 0.0
          %302 = vst [vmem:[%s287] sm:$0xff] 0.0
          %303 = vst [vmem:[%s287 + $0x8] sm:$0xff] 0.0
          %304 = vst [vmem:[%s287 + $0x10] sm:$0xff] 0.0
          %305 = vst [vmem:[%s287 + $0x18] sm:$0xff] 0.0
        $region40: #{tpu_custom_call.1} parent=27 // pred_fallthru
          _
        %v306 = vld [vmem:[%s248] sm:$0xff]
        %v307 = vld [vmem:[%s248 + $0x8] sm:$0xff]
        %v308 = vld [vmem:[%s248 + $0x10] sm:$0xff]
        %v309 = vld [vmem:[%s248 + $0x18] sm:$0xff]
        %v310 = vld [vmem:[%s239] sm:$0xff]
        %v311 = vld [vmem:[%s239 + $0x8] sm:$0xff]
        %v312 = vld [vmem:[%s239 + $0x10] sm:$0xff]
        %v313 = vld [vmem:[%s239 + $0x18] sm:$0xff]
        %vm314 = vcmp.gt.f32.partialorder %v306, 0.0
        %vm315 = vcmp.gt.f32.partialorder %v307, 0.0
        %vm316 = vcmp.gt.f32.partialorder %v308, 0.0
        %vm317 = vcmp.gt.f32.partialorder %v309, 0.0
        %v318 = vsel %vm314, %v306, 1.0
        %v319 = vsel %vm315, %v307, 1.0
        %v320 = vsel %vm316, %v308, 1.0
        %v321 = vsel %vm317, %v309, 1.0
        %v322 = vsel %vm314, %v310, 1.0
        %v323 = vsel %vm315, %v311, 1.0
        %v324 = vsel %vm316, %v312, 1.0
        %v325 = vsel %vm317, %v313, 1.0
        %v326 = vrcp.pop %v322
        %v327 = vmul.f32 %v318, %v326
        %v328 = vrcp.pop %v323
        %v329 = vmul.f32 %v319, %v328
        %v330 = vrcp.pop %v324
        %v331 = vmul.f32 %v320, %v330
        %v332 = vrcp.pop %v325
        %v333 = vmul.f32 %v321, %v332
        %v334 = vlog2.pop %v327
        %v335 = vmul.f32 %v334, 0.6931472
        %v336 = vlog2.pop %v329
        %v337 = vmul.f32 %v336, 0.6931472
        %v338 = vlog2.pop %v331
        %v339 = vmul.f32 %v338, 0.6931472
        %v340 = vlog2.pop %v333
        %v341 = vmul.f32 %v340, 0.6931472
        %v342 = vsel %vm314, 1, 0
        %v343 = vsel %vm315, 1, 0
        %v344 = vsel %vm316, 1, 0
        %v345 = vsel %vm317, 1, 0
        %v346 = vcvt.s32.f32 %v342
        %v347 = vcvt.s32.f32 %v343
        %v348 = vcvt.s32.f32 %v344
        %v349 = vcvt.s32.f32 %v345
        %v350 = vld [vmem:[%s273] sm:$0xff]
        %v351 = vld [vmem:[%s273 + $0x8] sm:$0xff]
        %v352 = vld [vmem:[%s273 + $0x10] sm:$0xff]
        %v353 = vld [vmem:[%s273 + $0x18] sm:$0xff]
        %v354 = vadd.f32 %v335, 0.0
        %v355 = vadd.f32 %v337, 0.0
        %v356 = vadd.f32 %v339, 0.0
        %v357 = vadd.f32 %v341, 0.0
        %v358 = vadd.f32 %v350, %v354
        %v359 = vadd.f32 %v351, %v355
        %v360 = vadd.f32 %v352, %v356
        %v361 = vadd.f32 %v353, %v357
        %362 = vst [vmem:[%s273] sm:$0xff] %v358
        %363 = vst [vmem:[%s273 + $0x8] sm:$0xff] %v359
        %364 = vst [vmem:[%s273 + $0x10] sm:$0xff] %v360
        %365 = vst [vmem:[%s273 + $0x18] sm:$0xff] %v361
        %v366 = vld [vmem:[%s280] sm:$0xff]
        %v367 = vld [vmem:[%s280 + $0x8] sm:$0xff]
        %v368 = vld [vmem:[%s280 + $0x10] sm:$0xff]
        %v369 = vld [vmem:[%s280 + $0x18] sm:$0xff]
        %v370 = vmul.f32 %v335, %v335
        %v371 = vmul.f32 %v337, %v337
        %v372 = vmul.f32 %v339, %v339
        %v373 = vmul.f32 %v341, %v341
        %v374 = vadd.f32 %v370, 0.0
        %v375 = vadd.f32 %v371, 0.0
        %v376 = vadd.f32 %v372, 0.0
        %v377 = vadd.f32 %v373, 0.0
        %v378 = vadd.f32 %v366, %v374
        %v379 = vadd.f32 %v367, %v375
        %v380 = vadd.f32 %v368, %v376
        %v381 = vadd.f32 %v369, %v377
        %382 = vst [vmem:[%s280] sm:$0xff] %v378
        %383 = vst [vmem:[%s280 + $0x8] sm:$0xff] %v379
        %384 = vst [vmem:[%s280 + $0x10] sm:$0xff] %v380
        %385 = vst [vmem:[%s280 + $0x18] sm:$0xff] %v381
        %v386 = vld [vmem:[%s287] sm:$0xff]
        %v387 = vld [vmem:[%s287 + $0x8] sm:$0xff]
        %v388 = vld [vmem:[%s287 + $0x10] sm:$0xff]
        %v389 = vld [vmem:[%s287 + $0x18] sm:$0xff]
        %v390 = vadd.f32 %v346, 0.0
        %v391 = vadd.f32 %v347, 0.0
        %v392 = vadd.f32 %v348, 0.0
        %v393 = vadd.f32 %v349, 0.0
        %v394 = vadd.f32 %v386, %v390
        %v395 = vadd.f32 %v387, %v391
        %v396 = vadd.f32 %v388, %v392
        %v397 = vadd.f32 %v389, %v393
        %398 = vst [vmem:[%s287] sm:$0xff] %v394
        %399 = vst [vmem:[%s287 + $0x8] sm:$0xff] %v395
        %400 = vst [vmem:[%s287 + $0x10] sm:$0xff] %v396
        %401 = vst [vmem:[%s287 + $0x18] sm:$0xff] %v397
        %s402 = sand.u32 %s104, 1
        %s403 = scalar_lea.sflag [#allocation4], %s402
        %s404 = sand.u32 %s104, 1
        %s405 = smul.addr %s404, 32
        %s406 = scalar_lea.vmem [#allocation7], %s405
        %s407 = sand.u32 %s28, 1
        %s408 = scalar_lea.sflag [#allocation9], %s407
        %s409 = sand.u32 %s130, 1
        %s410 = smul.addr %s409, 32
        %s411 = scalar_lea.vmem [#allocation8], %s410
        %s412 = sand.u32 %s28, 1
        %s413 = scalar_lea.sflag [#allocation9], %s412
        %s414 = sand.u32 %s156, 1
        %s415 = smul.addr %s414, 32
        %s416 = scalar_lea.vmem [#allocation10], %s415
        // Predicated region
        $region41: #{tpu_custom_call.1} parent=27 // pred_check
          %p417 = pneg %p114
        $region42: #{tpu_custom_call.1} parent=27 // pred_check_branch
          %419 = sbr.rel (%p417) target = $region44
        $region43: #{tpu_custom_call.1} parent=27 // pred_region
          %s421 = ssub.s32 512, 512
          %422 = vsyncadd %s403, %s421
          %s423 = smul.addr %s32, 4
          %s424 = smul.addr %s423, 128
          %s425 = scalar_lea.hbm %s2, %s424
          %s427 = sshll.u32 %s406, 4
          %s428 = int_to_ptr.vmem [resolvable:$true] %s427
          %430 = dma.vmem_to_hbm [thread:$0]  %s428, 512, %s425, %s403
        $region44: #{tpu_custom_call.1} parent=27 // pred_fallthru
          _
        // Predicated region
        $region45: #{tpu_custom_call.1} parent=27 // pred_check
          %p431 = pneg %p140
        $region46: #{tpu_custom_call.1} parent=27 // pred_check_branch
          %433 = sbr.rel (%p431) target = $region48
        $region47: #{tpu_custom_call.1} parent=27 // pred_region
          %s435 = ssub.s32 512, 512
          %436 = vsyncadd %s408, %s435
          %s437 = smul.addr %s32, 4
          %s438 = smul.addr %s437, 128
          %s439 = scalar_lea.hbm %s3, %s438
          %s441 = sshll.u32 %s411, 4
          %s442 = int_to_ptr.vmem [resolvable:$true] %s441
          %444 = dma.vmem_to_hbm [thread:$0]  %s442, 512, %s439, %s408
        $region48: #{tpu_custom_call.1} parent=27 // pred_fallthru
          _
        // Predicated region
        $region49: #{tpu_custom_call.1} parent=27 // pred_check
          %p445 = pneg %p166
        $region50: #{tpu_custom_call.1} parent=27 // pred_check_branch
          %447 = sbr.rel (%p445) target = $region52
        $region51: #{tpu_custom_call.1} parent=27 // pred_region
          %s449 = ssub.s32 512, 512
          %450 = vsyncadd %s413, %s449
          %s451 = smul.addr %s32, 4
          %s452 = smul.addr %s451, 128
          %s453 = scalar_lea.hbm %s4, %s452
          %s455 = sshll.u32 %s416, 4
          %s456 = int_to_ptr.vmem [resolvable:$true] %s455
          %458 = dma.vmem_to_hbm [thread:$0]  %s456, 512, %s453, %s413
        $region52: #{tpu_custom_call.1} parent=27 // pred_fallthru
          _
      $region28: #{tpu_custom_call.1} parent=5 // pred_fallthru
        _
      %p459 = scmp.le.s32.totalorder 2, %s23
      // Predicated region
      $region53: #{tpu_custom_call.1} parent=5 // pred_check
        %p460 = pneg %p459
      $region54: #{tpu_custom_call.1} parent=5 // pred_check_branch
        %462 = sbr.rel (%p460) target = $region56
      $region55: #{tpu_custom_call.1} parent=5 // pred_region
        %s463 = ssub.s32 %s23, 2
        // Predicated region
        $region57: #{tpu_custom_call.1} parent=55 // pred_check
          %p464 = pneg %p120
        $region58: #{tpu_custom_call.1} parent=55 // pred_check_branch
          %466 = sbr.rel (%p464) target = $region60
        $region59: #{tpu_custom_call.1} parent=55 // pred_region
          %s467 = sand.u32 %s105, 1
          %s468 = scalar_lea.sflag [#allocation4], %s467
          %s469 = sand.u32 %s105, 1
          %s470 = smul.addr %s469, 32
          %s471 = scalar_lea.vmem [#allocation7], %s470
          %472 = dma.done %s468, 512
        $region60: #{tpu_custom_call.1} parent=55 // pred_fallthru
          _
        // Predicated region
        $region61: #{tpu_custom_call.1} parent=55 // pred_check
          %p473 = pneg %p146
        $region62: #{tpu_custom_call.1} parent=55 // pred_check_branch
          %475 = sbr.rel (%p473) target = $region64
        $region63: #{tpu_custom_call.1} parent=55 // pred_region
          %s476 = sand.u32 %s29, 1
          %s477 = scalar_lea.sflag [#allocation9], %s476
          %s478 = sand.u32 %s131, 1
          %s479 = smul.addr %s478, 32
          %s480 = scalar_lea.vmem [#allocation8], %s479
          %481 = dma.done %s477, 512
        $region64: #{tpu_custom_call.1} parent=55 // pred_fallthru
          _
        // Predicated region
        $region65: #{tpu_custom_call.1} parent=55 // pred_check
          %p482 = pneg %p172
        $region66: #{tpu_custom_call.1} parent=55 // pred_check_branch
          %484 = sbr.rel (%p482) target = $region68
        $region67: #{tpu_custom_call.1} parent=55 // pred_region
          %s485 = sand.u32 %s29, 1
          %s486 = scalar_lea.sflag [#allocation9], %s485
          %s487 = sand.u32 %s157, 1
          %s488 = smul.addr %s487, 32
          %s489 = scalar_lea.vmem [#allocation10], %s488
          %490 = dma.done %s486, 512
        $region68: #{tpu_custom_call.1} parent=55 // pred_fallthru
          _
      $region56: #{tpu_custom_call.1} parent=5 // pred_fallthru
        _
    $region6: #{tpu_custom_call.1} parent=1 // loop_footer
      %s27 = sadd.s32 1, %s23
    $region7: #{tpu_custom_call.1} parent=1 // loop_footer_branch
      %22 = sbr.rel target = $region3
    $region8: #{tpu_custom_call.1} parent=1 // loop_exit
      _
    %491 = vsyncpa [#allocation3], 1
    %s492 = scalar_lea.sflag [#allocation3], 1
    %493 = vsyncpa %s492, 1
    %494 = vsyncpa [#allocation6], 1
    %s495 = scalar_lea.sflag [#allocation6], 1
    %496 = vsyncpa %s495, 1
    %497 = vsyncpa [#allocation4], 1
    %s498 = scalar_lea.sflag [#allocation4], 1
    %499 = vsyncpa %s498, 1
    %500 = vsyncpa [#allocation9], 1
    %s501 = scalar_lea.sflag [#allocation9], 1
    %502 = vsyncpa %s501, 1

</llo_original>
